<compile_context>
chip_gen: v6e
topology: v6e:2x2x1
jax: 0.10.0
libtpu: 0.0.40
codegen_flags: <defaults>
</compile_context>

<pallas_src>
import functools

import jax
import jax.numpy as jnp
from jax.experimental import pallas as pl
from jax.experimental.pallas import tpu as pltpu

INPUT_SIZE = 4
HIDDEN_SIZE = 6
OUTPUT_SIZE = 4
BATCH = 16

LANE_PAD = 128   # lane-dense width for the hidden activations (VMEM-only, never hits HBM)
BLOCK_M = 8      # batch tile (multiple of 8); 2 grid steps at BATCH=16 feeds both v7x TCs


def phi_kernel(x_ref, w1_ref, b1_ref, w2_ref, b2_ref, w3_ref, b3_ref, o_ref):
    # Weights are pre-transposed to (K, N) and zero-padded to 128 lanes, so each
    # dot is a single straight MXU pass with no in-kernel transpose.
    cdt = w1_ref.dtype                                  # f32 demo; bf16 on v6e/v7x if requested
    x = x_ref[...].astype(cdt)                          # (bm, in)  -- K kept at true width

    # fc1 + relu   (bias-add / ReLU stay f32: v5e has no bf16 VPU)
    h = jnp.dot(x, w1_ref[...], preferred_element_type=jnp.float32)
    h = jnp.maximum(h + b1_ref[...], 0.0)               # (bm, 128) f32
    # fc2 + relu
    h = jnp.dot(h.astype(cdt), w2_ref[...], preferred_element_type=jnp.float32)
    h = jnp.maximum(h + b2_ref[...], 0.0)               # (bm, 128) f32
    # fc3 (no activation)
    o = jnp.dot(h.astype(cdt), w3_ref[...], preferred_element_type=jnp.float32)
    o = o + b3_ref[...]                                  # (bm, 128) f32

    # Store only the true output lanes: masked narrow store, but no 32x padded
    # HBM writeback and no wrapper-side re-slice pass.
    o_ref[...] = o[:, : o_ref.shape[-1]].astype(o_ref.dtype)


def _pad2(a, rows, cols):
    """Zero-pad a 2D array up to (rows, cols)."""
    return jnp.zeros((rows, cols), a.dtype).at[: a.shape[0], : a.shape[1]].set(a)


def prepare_params(params, *, matmul_dtype=jnp.float32, fpad=LANE_PAD):
    """One-time layout prep (hoisted out of the per-call path).

    Transposes PyTorch-style (out, in) weights to (in, out) and zero-pads the
    hidden feature dims to 128 lanes.  Zero padding is exact through ReLU:
    relu(0*x + 0) == 0, so padded lanes stay zero through every layer.
    Returns (prepped_arrays, out_size).
    """
    w1, b1, w2, b2, w3, b3 = params
    in_size = w1.shape[1]
    out_size = int(w3.shape[0])

    w1t = _pad2(w1.T, in_size, fpad).astype(matmul_dtype)   # (in, 128)
    w2t = _pad2(w2.T, fpad, fpad).astype(matmul_dtype)      # (128, 128)
    w3t = _pad2(w3.T, fpad, fpad).astype(matmul_dtype)      # (128, 128)
    b1p = _pad2(b1.reshape(1, -1), 1, fpad).astype(jnp.float32)
    b2p = _pad2(b2.reshape(1, -1), 1, fpad).astype(jnp.float32)
    b3p = _pad2(b3.reshape(1, -1), 1, fpad).astype(jnp.float32)
    return (w1t, b1p, w2t, b2p, w3t, b3p), out_size


@functools.partial(jax.jit, static_argnames=("out_size", "block_m"))
def phi_forward(x, prepped, *, out_size, block_m=BLOCK_M):
    """x: (B, INPUT_SIZE) f32; prepped: output of prepare_params."""
    w1t, b1p, w2t, b2p, w3t, b3p = prepped
    B, in_size = x.shape

    nb = pl.cdiv(B, block_m)
    Bp = nb * block_m
    xp = x if Bp == B else jnp.pad(x, ((0, Bp - B), (0, 0)))

    # Constant index_map -> weights/biases are DMA'd once and stay VMEM-resident
    # across all grid steps; only x tiles and output tiles stream.
    resident = lambda shape: pl.BlockSpec(shape, lambda i: (0, 0))

    out = pl.pallas_call(
        phi_kernel,
        out_shape=jax.ShapeDtypeStruct((Bp, out_size), jnp.float32),
        grid=(nb,),
        in_specs=[
            pl.BlockSpec((block_m, in_size), lambda i: (i, 0)),   # x streams (K kept at 4)
            resident(w1t.shape),                                  # w1t  (in, 128)
            resident(b1p.shape),                                  # b1   (1, 128)
            resident(w2t.shape),                                  # w2t  (128, 128)
            resident(b2p.shape),                                  # b2   (1, 128)
            resident(w3t.shape),                                  # w3t  (128, 128)
            resident(b3p.shape),                                  # b3   (1, 128)
        ],
        out_specs=pl.BlockSpec((block_m, out_size), lambda i: (i, 0)),  # narrow output
        compiler_params=pltpu.CompilerParams(
            dimension_semantics=("parallel",),   # shards batch over v7x's 2 TCs; no-op on v5e/v6e
        ),
    )(xp, w1t, b1p, w2t, b2p, w3t, b3p)

    return out[:B]


def init_params(key):
    # Deterministic synthetic init mirroring nn.Linear (W is (out, in), b is (out,)).
    ks = jax.random.split(key, 6)

    def u(k, shape, fan_in):
        bound = 1.0 / jnp.sqrt(fan_in)
        return jax.random.uniform(k, shape, jnp.float32, -bound, bound)

    w1 = u(ks[0], (HIDDEN_SIZE, INPUT_SIZE), INPUT_SIZE)
    b1 = u(ks[1], (HIDDEN_SIZE,), INPUT_SIZE)
    w2 = u(ks[2], (HIDDEN_SIZE, HIDDEN_SIZE), HIDDEN_SIZE)
    b2 = u(ks[3], (HIDDEN_SIZE,), HIDDEN_SIZE)
    w3 = u(ks[4], (OUTPUT_SIZE, HIDDEN_SIZE), HIDDEN_SIZE)
    b3 = u(ks[5], (OUTPUT_SIZE,), HIDDEN_SIZE)
    return w1, b1, w2, b2, w3, b3


def phi_reference(x, params):
    # Highest-precision f32 reference (the kernel's dots go through the MXU's
    # default f32 path, so the comparison tolerance budgets only matmul rounding).
    w1, b1, w2, b2, w3, b3 = params
    hp = jax.lax.Precision.HIGHEST
    h = jnp.maximum(jnp.dot(x, w1.T, precision=hp) + b1, 0.0)
    h = jnp.maximum(jnp.dot(h, w2.T, precision=hp) + b2, 0.0)
    return jnp.dot(h, w3.T, precision=hp) + b3


if __name__ == "__main__":
    key = jax.random.PRNGKey(0)
    k_x, k_p = jax.random.split(key)
    x = jax.random.normal(k_x, (BATCH, INPUT_SIZE), jnp.float32)
    params = init_params(k_p)

    # One-time layout prep, outside the forward path.  (For v6e/v7x throughput
    # runs: prepare_params(params, matmul_dtype=jnp.bfloat16) and widen the
    # tolerance below.)
    prepped, out_size = prepare_params(params)
    prepped = jax.block_until_ready(prepped)

    out = phi_forward(x, prepped, out_size=out_size, block_m=BLOCK_M)
    out = jax.block_until_ready(out)

    ref = phi_reference(x, params)
    assert out.shape == (BATCH, OUTPUT_SIZE)
    # Tolerance covers TPU default-precision matmul passes vs. the HIGHEST-precision
    # f32 reference; structural errors would be O(1), far above this.
    err = float(jnp.max(jnp.abs(out - ref)))
    assert err < 1e-2, f"max abs error {err}"
    print("KERNEL_OK")
</pallas_src>

<mosaic_0001>
module attributes {stable_mosaic.version = 11 : i64} {
  func.func @phi_kernel(%arg0: i32, %arg1: memref<8x4xf32, #tpu.memory_space<vmem>>, %arg2: memref<4x128xf32, #tpu.memory_space<vmem>>, %arg3: memref<1x128xf32, #tpu.memory_space<vmem>>, %arg4: memref<128x128xf32, #tpu.memory_space<vmem>>, %arg5: memref<1x128xf32, #tpu.memory_space<vmem>>, %arg6: memref<128x128xf32, #tpu.memory_space<vmem>>, %arg7: memref<1x128xf32, #tpu.memory_space<vmem>>, %arg8: memref<8x4xf32, #tpu.memory_space<vmem>>) attributes {dimension_semantics = [#tpu.dimension_semantics<parallel>], iteration_bounds = array<i64: 2>, scalar_prefetch = 0 : i64, scratch_operands = 0 : i64, tpu.core_type = #tpu.core_type<tc>, window_params = [{transform_indices = @transform_0, window_bounds = array<i64: 8, 4>}, {pipeline_mode = #tpu.pipeline_mode<synchronous>, transform_indices = @transform_1, window_bounds = array<i64: 4, 128>}, {pipeline_mode = #tpu.pipeline_mode<synchronous>, transform_indices = @transform_2, window_bounds = array<i64: 1, 128>}, {pipeline_mode = #tpu.pipeline_mode<synchronous>, transform_indices = @transform_3, window_bounds = array<i64: 128, 128>}, {pipeline_mode = #tpu.pipeline_mode<synchronous>, transform_indices = @transform_4, window_bounds = array<i64: 1, 128>}, {pipeline_mode = #tpu.pipeline_mode<synchronous>, transform_indices = @transform_5, window_bounds = array<i64: 128, 128>}, {pipeline_mode = #tpu.pipeline_mode<synchronous>, transform_indices = @transform_6, window_bounds = array<i64: 1, 128>}, {transform_indices = @transform_7, window_bounds = array<i64: 8, 4>}]} {
    %c0 = arith.constant 0 : index
    %c0_0 = arith.constant 0 : index
    %0 = vector.load %arg1[%c0, %c0_0] : memref<8x4xf32, #tpu.memory_space<vmem>>, vector<8x4xf32>
    %c0_1 = arith.constant 0 : index
    %c0_2 = arith.constant 0 : index
    %1 = vector.load %arg2[%c0_1, %c0_2] : memref<4x128xf32, #tpu.memory_space<vmem>>, vector<4x128xf32>
    %cst = arith.constant dense<0.000000e+00> : vector<8x128xf32>
    %2 = tpu.matmul %0, %1, %cst {dimension_numbers = #tpu.dot_dimension_numbers<[1], [0], [0], [1], [0, 0, 1, 1], [], []>} : vector<8x4xf32>, vector<4x128xf32>, vector<8x128xf32> -> vector<8x128xf32>
    %c0_3 = arith.constant 0 : index
    %c0_4 = arith.constant 0 : index
    %3 = vector.load %arg3[%c0_3, %c0_4] : memref<1x128xf32, #tpu.memory_space<vmem>>, vector<1x128xf32>
    %4 = vector.broadcast %3 : vector<1x128xf32> to vector<8x128xf32>
    %5 = arith.addf %2, %4 : vector<8x128xf32>
    %cst_5 = arith.constant 0.000000e+00 : f32
    %6 = vector.broadcast %cst_5 : f32 to vector<8x128xf32>
    %7 = arith.maximumf %5, %6 : vector<8x128xf32>
    %c0_6 = arith.constant 0 : index
    %c0_7 = arith.constant 0 : index
    %8 = vector.load %arg4[%c0_6, %c0_7] : memref<128x128xf32, #tpu.memory_space<vmem>>, vector<128x128xf32>
    %cst_8 = arith.constant dense<0.000000e+00> : vector<8x128xf32>
    %9 = tpu.matmul %7, %8, %cst_8 {dimension_numbers = #tpu.dot_dimension_numbers<[1], [0], [0], [1], [0, 0, 1, 1], [], []>} : vector<8x128xf32>, vector<128x128xf32>, vector<8x128xf32> -> vector<8x128xf32>
    %c0_9 = arith.constant 0 : index
    %c0_10 = arith.constant 0 : index
    %10 = vector.load %arg5[%c0_9, %c0_10] : memref<1x128xf32, #tpu.memory_space<vmem>>, vector<1x128xf32>
    %11 = vector.broadcast %10 : vector<1x128xf32> to vector<8x128xf32>
    %12 = arith.addf %9, %11 : vector<8x128xf32>
    %cst_11 = arith.constant 0.000000e+00 : f32
    %13 = vector.broadcast %cst_11 : f32 to vector<8x128xf32>
    %14 = arith.maximumf %12, %13 : vector<8x128xf32>
    %c0_12 = arith.constant 0 : index
    %c0_13 = arith.constant 0 : index
    %15 = vector.load %arg6[%c0_12, %c0_13] : memref<128x128xf32, #tpu.memory_space<vmem>>, vector<128x128xf32>
    %cst_14 = arith.constant dense<0.000000e+00> : vector<8x128xf32>
    %16 = tpu.matmul %14, %15, %cst_14 {dimension_numbers = #tpu.dot_dimension_numbers<[1], [0], [0], [1], [0, 0, 1, 1], [], []>} : vector<8x128xf32>, vector<128x128xf32>, vector<8x128xf32> -> vector<8x128xf32>
    %c0_15 = arith.constant 0 : index
    %c0_16 = arith.constant 0 : index
    %17 = vector.load %arg7[%c0_15, %c0_16] : memref<1x128xf32, #tpu.memory_space<vmem>>, vector<1x128xf32>
    %18 = vector.broadcast %17 : vector<1x128xf32> to vector<8x128xf32>
    %19 = arith.addf %16, %18 : vector<8x128xf32>
    %20 = vector.extract_strided_slice %19 {offsets = [0, 0], sizes = [8, 4], strides = [1, 1]} : vector<8x128xf32> to vector<8x4xf32>
    %c0_17 = arith.constant 0 : index
    %c0_18 = arith.constant 0 : index
    %21 = vector.load %arg8[%c0_17, %c0_18] : memref<8x4xf32, #tpu.memory_space<vmem>>, vector<8x4xf32>
    tpu.vector_store %arg8[%c0_17, %c0_18], %20 {strides = array<i32>} : memref<8x4xf32, #tpu.memory_space<vmem>>, vector<8x4xf32>,
    return
  }
  func.func @transform_0(%arg0: i32) -> (i32, i32) {
    %c0_i32 = arith.constant 0 : i32
    %c0_i32_0 = arith.constant 0 : i32
    return %arg0, %c0_i32 : i32, i32
  }
  func.func @transform_1(%arg0: i32) -> (i32, i32) {
    %c0_i32 = arith.constant 0 : i32
    %c0_i32_0 = arith.constant 0 : i32
    %c0_i32_1 = arith.constant 0 : i32
    return %c0_i32, %c0_i32_0 : i32, i32
  }
  func.func @transform_2(%arg0: i32) -> (i32, i32) {
    %c0_i32 = arith.constant 0 : i32
    %c0_i32_0 = arith.constant 0 : i32
    %c0_i32_1 = arith.constant 0 : i32
    return %c0_i32, %c0_i32_0 : i32, i32
  }
  func.func @transform_3(%arg0: i32) -> (i32, i32) {
    %c0_i32 = arith.constant 0 : i32
    %c0_i32_0 = arith.constant 0 : i32
    %c0_i32_1 = arith.constant 0 : i32
    return %c0_i32, %c0_i32_0 : i32, i32
  }
  func.func @transform_4(%arg0: i32) -> (i32, i32) {
    %c0_i32 = arith.constant 0 : i32
    %c0_i32_0 = arith.constant 0 : i32
    %c0_i32_1 = arith.constant 0 : i32
    return %c0_i32, %c0_i32_0 : i32, i32
  }
  func.func @transform_5(%arg0: i32) -> (i32, i32) {
    %c0_i32 = arith.constant 0 : i32
    %c0_i32_0 = arith.constant 0 : i32
    %c0_i32_1 = arith.constant 0 : i32
    return %c0_i32, %c0_i32_0 : i32, i32
  }
  func.func @transform_6(%arg0: i32) -> (i32, i32) {
    %c0_i32 = arith.constant 0 : i32
    %c0_i32_0 = arith.constant 0 : i32
    %c0_i32_1 = arith.constant 0 : i32
    return %c0_i32, %c0_i32_0 : i32, i32
  }
  func.func @transform_7(%arg0: i32) -> (i32, i32) {
    %c0_i32 = arith.constant 0 : i32
    %c0_i32_0 = arith.constant 0 : i32
    return %arg0, %c0_i32 : i32, i32
  }
}

</mosaic_0001>

<llo_original>
// kernel: phi_forward.1
$region0: #{phi_forward.1}
  #allocation0 [shape = 'u32[]', space=smem, size = 0x4, offset = 0x4, fixed_abs, tag = 'smem constant byte address 0x4 - core index']
  #allocation1 [shape = 'u32[144,128]{1,0:T(1,128)}', space=vmem, size = 0x12000, scoped, tag = 'internal scratch']
  %s0 = inlined_call_operand.vmem [shape: f32[16,4], index: 0, kind: input, shape index: {}]
  %s1 = inlined_call_operand.vmem [shape: f32[4,128], index: 1, kind: input, shape index: {}]
  %s2 = inlined_call_operand.vmem [shape: f32[1,128], index: 2, kind: input, shape index: {}]
  %s3 = inlined_call_operand.hbm [shape: f32[128,128], index: 3, kind: input, shape index: {}]
  %s4 = inlined_call_operand.vmem [shape: f32[1,128], index: 4, kind: input, shape index: {}]
  %s5 = inlined_call_operand.hbm [shape: f32[128,128], index: 5, kind: input, shape index: {}]
  %s6 = inlined_call_operand.vmem [shape: f32[1,128], index: 6, kind: input, shape index: {}]
  %s7 = inlined_call_operand.vmem [shape: f32[16,4], index: 7, kind: output, shape index: {}]
  %s8 = sld [smem:[#allocation0]]
  $region69: #{phi_forward.1} parent=0
    _
  %s10 = ssub.s32 1, %s8
  %s11 = scalar_select 0, %s10, %s8
  $region1: #{phi_forward.1} parent=0
    #allocation2 [shape = 'u8[65536]{0}', space=vmem, size = 0x10000, scoped, tag = 'input window, operand 3, single buffered']
    #allocation3 [shape = 's32[2]{0}', space=sflag, size = 0x8, scoped, tag = 'scoped memory for phi_forward.1']
    #allocation4 [shape = 'u8[65536]{0}', space=vmem, size = 0x10000, scoped, tag = 'input window, operand 5, single buffered']
    #allocation5 [shape = 's32[1]{0}', space=sflag, size = 0x4, scoped, tag = 'scoped memory for phi_forward.1']
    %12 = vsyncpa [#allocation3], 0
    %13 = vsyncpa [#allocation5], 0
    loop: start=0, step=1, limit=4
    $region2: #{phi_forward.1} parent=1 // loop_pre_header
      _
    $region3: #{phi_forward.1} parent=1 // loop_header
      %s15 = sphi 0, %s19
      %p16 = scmp.ge.s32.totalorder %s15, 4
      %s25 = sphi 0, %s27
      %s28 = sphi 0, %s25
      %s29 = sphi 0, %s28
      %s45 = sphi 0, %s29
      %s49 = sphi 0, %s49
      %s51 = sphi 0, %s49
      %s52 = sphi 0, %s51
      %s66 = sphi 0, %s52
      %s70 = sphi 0, %s70
      %s72 = sphi 0, %s70
      %s73 = sphi 0, %s72
      %s87 = sphi 0, %s73
      %s91 = sphi 0, %s91
      %s93 = sphi 0, %s91
      %s94 = sphi 0, %s93
      %s108 = sphi 0, %s94
      %s112 = sphi 0, %s112
      %s114 = sphi 0, %s112
      %s115 = sphi 0, %s114
      %s129 = sphi 0, %s115
      %s133 = sphi 0, %s133
      %s135 = sphi 0, %s133
      %s136 = sphi 0, %s135
      %s150 = sphi 0, %s136
      %s154 = sphi 0, %s154
      %s156 = sphi 0, %s154
      %s157 = sphi 0, %s156
      %s171 = sphi 0, %s157
      %s177 = sphi 0, %s179
      %s180 = sphi 0, %s177
      %s181 = sphi 0, %s180
      %s197 = sphi 0, %s181
    $region4: #{phi_forward.1} parent=1 // loop_header_branch
      %18 = sbr.rel (%p16) target = $region8
    $region5: #{phi_forward.1} parent=1 // loop_body
      %s20 = ssub.s32 %s15, 1
      %s21 = ssub.s32 %s15, 2
      %s22 = sadd.s32 %s15, 1
      %s23 = ssub.s32 %s15, %s22
      %p24 = scmp.eq.s32.totalorder %s23, 0
      %s26 = sadd.s32 %s25, 1
      %s27 = scalar_select %p24, %s25, %s26
      %p30 = pneg %p24
      %p31 = scmp.eq.s32.totalorder %s15, 1
      %p32 = por %p30, %p31
      %p33 = scmp.ne.s32.totalorder %s25, %s28
      %p34 = scmp.eq.s32.totalorder %s15, 0
      %p35 = por %p33, %p34
      %p36 = scmp.ne.s32.totalorder %s25, %s28
      %p37 = scmp.eq.s32.totalorder %s20, 1
      %p38 = por %p36, %p37
      %p39 = scmp.ne.s32.totalorder %s28, %s29
      %p40 = scmp.eq.s32.totalorder %s20, 0
      %p41 = por %p39, %p40
      %p42 = scmp.ne.s32.totalorder %s28, %s29
      %p43 = scmp.eq.s32.totalorder %s21, 1
      %p44 = por %p42, %p43
      %p46 = scmp.ne.s32.totalorder %s29, %s45
      %p47 = scmp.eq.s32.totalorder %s21, 0
      %p48 = por %p46, %p47
      %s50 = sadd.s32 %s49, 1
      %p53 = scmp.eq.s32.totalorder %s15, 1
      %p54 = scmp.ne.s32.totalorder %s49, %s51
      %p55 = scmp.eq.s32.totalorder %s15, 0
      %p56 = por %p54, %p55
      %p57 = scmp.ne.s32.totalorder %s49, %s51
      %p58 = scmp.eq.s32.totalorder %s20, 1
      %p59 = por %p57, %p58
      %p60 = scmp.ne.s32.totalorder %s51, %s52
      %p61 = scmp.eq.s32.totalorder %s20, 0
      %p62 = por %p60, %p61
      %p63 = scmp.ne.s32.totalorder %s51, %s52
      %p64 = scmp.eq.s32.totalorder %s21, 1
      %p65 = por %p63, %p64
      %p67 = scmp.ne.s32.totalorder %s52, %s66
      %p68 = scmp.eq.s32.totalorder %s21, 0
      %p69 = por %p67, %p68
      %s71 = sadd.s32 %s70, 1
      %p74 = scmp.eq.s32.totalorder %s15, 1
      %p75 = scmp.ne.s32.totalorder %s70, %s72
      %p76 = scmp.eq.s32.totalorder %s15, 0
      %p77 = por %p75, %p76
      %p78 = scmp.ne.s32.totalorder %s70, %s72
      %p79 = scmp.eq.s32.totalorder %s20, 1
      %p80 = por %p78, %p79
      %p81 = scmp.ne.s32.totalorder %s72, %s73
      %p82 = scmp.eq.s32.totalorder %s20, 0
      %p83 = por %p81, %p82
      %p84 = scmp.ne.s32.totalorder %s72, %s73
      %p85 = scmp.eq.s32.totalorder %s21, 1
      %p86 = por %p84, %p85
      %p88 = scmp.ne.s32.totalorder %s73, %s87
      %p89 = scmp.eq.s32.totalorder %s21, 0
      %p90 = por %p88, %p89
      %s92 = sadd.s32 %s91, 1
      %p95 = scmp.eq.s32.totalorder %s15, 1
      %p96 = scmp.ne.s32.totalorder %s91, %s93
      %p97 = scmp.eq.s32.totalorder %s15, 0
      %p98 = por %p96, %p97
      %p99 = scmp.ne.s32.totalorder %s91, %s93
      %p100 = scmp.eq.s32.totalorder %s20, 1
      %p101 = por %p99, %p100
      %p102 = scmp.ne.s32.totalorder %s93, %s94
      %p103 = scmp.eq.s32.totalorder %s20, 0
      %p104 = por %p102, %p103
      %p105 = scmp.ne.s32.totalorder %s93, %s94
      %p106 = scmp.eq.s32.totalorder %s21, 1
      %p107 = por %p105, %p106
      %p109 = scmp.ne.s32.totalorder %s94, %s108
      %p110 = scmp.eq.s32.totalorder %s21, 0
      %p111 = por %p109, %p110
      %s113 = sadd.s32 %s112, 1
      %p116 = scmp.eq.s32.totalorder %s15, 1
      %p117 = scmp.ne.s32.totalorder %s112, %s114
      %p118 = scmp.eq.s32.totalorder %s15, 0
      %p119 = por %p117, %p118
      %p120 = scmp.ne.s32.totalorder %s112, %s114
      %p121 = scmp.eq.s32.totalorder %s20, 1
      %p122 = por %p120, %p121
      %p123 = scmp.ne.s32.totalorder %s114, %s115
      %p124 = scmp.eq.s32.totalorder %s20, 0
      %p125 = por %p123, %p124
      %p126 = scmp.ne.s32.totalorder %s114, %s115
      %p127 = scmp.eq.s32.totalorder %s21, 1
      %p128 = por %p126, %p127
      %p130 = scmp.ne.s32.totalorder %s115, %s129
      %p131 = scmp.eq.s32.totalorder %s21, 0
      %p132 = por %p130, %p131
      %s134 = sadd.s32 %s133, 1
      %p137 = scmp.eq.s32.totalorder %s15, 1
      %p138 = scmp.ne.s32.totalorder %s133, %s135
      %p139 = scmp.eq.s32.totalorder %s15, 0
      %p140 = por %p138, %p139
      %p141 = scmp.ne.s32.totalorder %s133, %s135
      %p142 = scmp.eq.s32.totalorder %s20, 1
      %p143 = por %p141, %p142
      %p144 = scmp.ne.s32.totalorder %s135, %s136
      %p145 = scmp.eq.s32.totalorder %s20, 0
      %p146 = por %p144, %p145
      %p147 = scmp.ne.s32.totalorder %s135, %s136
      %p148 = scmp.eq.s32.totalorder %s21, 1
      %p149 = por %p147, %p148
      %p151 = scmp.ne.s32.totalorder %s136, %s150
      %p152 = scmp.eq.s32.totalorder %s21, 0
      %p153 = por %p151, %p152
      %s155 = sadd.s32 %s154, 1
      %p158 = scmp.eq.s32.totalorder %s15, 1
      %p159 = scmp.ne.s32.totalorder %s154, %s156
      %p160 = scmp.eq.s32.totalorder %s15, 0
      %p161 = por %p159, %p160
      %p162 = scmp.ne.s32.totalorder %s154, %s156
      %p163 = scmp.eq.s32.totalorder %s20, 1
      %p164 = por %p162, %p163
      %p165 = scmp.ne.s32.totalorder %s156, %s157
      %p166 = scmp.eq.s32.totalorder %s20, 0
      %p167 = por %p165, %p166
      %p168 = scmp.ne.s32.totalorder %s156, %s157
      %p169 = scmp.eq.s32.totalorder %s21, 1
      %p170 = por %p168, %p169
      %p172 = scmp.ne.s32.totalorder %s157, %s171
      %p173 = scmp.eq.s32.totalorder %s21, 0
      %p174 = por %p172, %p173
      %s175 = ssub.s32 %s15, %s22
      %p176 = scmp.eq.s32.totalorder %s175, 0
      %s178 = sadd.s32 %s177, 1
      %s179 = scalar_select %p176, %s177, %s178
      %p182 = pneg %p176
      %p183 = scmp.eq.s32.totalorder %s15, 1
      %p184 = por %p182, %p183
      %p185 = scmp.ne.s32.totalorder %s177, %s180
      %p186 = scmp.eq.s32.totalorder %s15, 0
      %p187 = por %p185, %p186
      %p188 = scmp.ne.s32.totalorder %s177, %s180
      %p189 = scmp.eq.s32.totalorder %s20, 1
      %p190 = por %p188, %p189
      %p191 = scmp.ne.s32.totalorder %s180, %s181
      %p192 = scmp.eq.s32.totalorder %s20, 0
      %p193 = por %p191, %p192
      %p194 = scmp.ne.s32.totalorder %s180, %s181
      %p195 = scmp.eq.s32.totalorder %s21, 1
      %p196 = por %p194, %p195
      %p198 = scmp.ne.s32.totalorder %s181, %s197
      %p199 = scmp.eq.s32.totalorder %s21, 0
      %p200 = por %p198, %p199
      %p201 = scmp.le.s32.totalorder 1, %s15
      %p202 = scmp.lt.s32.totalorder %s15, 3
      %p203 = pnand %p201, %p202
      %p204 = pneg %p203
      // Predicated region
      $region9: #{phi_forward.1} parent=5 // pred_check
        _
      $region10: #{phi_forward.1} parent=5 // pred_check_branch
        %206 = sbr.rel (%p203) target = $region12
      $region11: #{phi_forward.1} parent=5 // pred_region
        %s207 = ssub.s32 %s15, 1
        // Predicated region
        $region13: #{phi_forward.1} parent=11 // pred_check
          %p208 = pneg %p62
        $region14: #{phi_forward.1} parent=11 // pred_check_branch
          %210 = sbr.rel (%p208) target = $region16
        $region15: #{phi_forward.1} parent=11 // pred_region
          _
        $region16: #{phi_forward.1} parent=11 // pred_fallthru
          _
        // Predicated region
        $region17: #{phi_forward.1} parent=11 // pred_check
          %p211 = pneg %p83
        $region18: #{phi_forward.1} parent=11 // pred_check_branch
          %213 = sbr.rel (%p211) target = $region20
        $region19: #{phi_forward.1} parent=11 // pred_region
          _
        $region20: #{phi_forward.1} parent=11 // pred_fallthru
          _
        // Predicated region
        $region21: #{phi_forward.1} parent=11 // pred_check
          %p214 = pneg %p104
        $region22: #{phi_forward.1} parent=11 // pred_check_branch
          %216 = sbr.rel (%p214) target = $region24
        $region23: #{phi_forward.1} parent=11 // pred_region
          %s218 = ssub.s32 2048, 2048
          %219 = vsyncadd [#allocation3], %s218
          %s220 = sshll.u32 [#allocation2], 4
          %s221 = int_to_ptr.vmem [resolvable:$true] %s220
          %226 = dma.hbm_to_vmem [thread:$0]  %s3, 2048, %s221, [#allocation3], 128, 128, 8
        $region24: #{phi_forward.1} parent=11 // pred_fallthru
          _
        // Predicated region
        $region25: #{phi_forward.1} parent=11 // pred_check
          %p227 = pneg %p125
        $region26: #{phi_forward.1} parent=11 // pred_check_branch
          %229 = sbr.rel (%p227) target = $region28
        $region27: #{phi_forward.1} parent=11 // pred_region
          _
        $region28: #{phi_forward.1} parent=11 // pred_fallthru
          _
        // Predicated region
        $region29: #{phi_forward.1} parent=11 // pred_check
          %p230 = pneg %p146
        $region30: #{phi_forward.1} parent=11 // pred_check_branch
          %232 = sbr.rel (%p230) target = $region32
        $region31: #{phi_forward.1} parent=11 // pred_region
          %s234 = ssub.s32 2048, 2048
          %235 = vsyncadd [#allocation5], %s234
          %s236 = sshll.u32 [#allocation4], 4
          %s237 = int_to_ptr.vmem [resolvable:$true] %s236
          %242 = dma.hbm_to_vmem [thread:$0]  %s5, 2048, %s237, [#allocation5], 128, 128, 8
        $region32: #{phi_forward.1} parent=11 // pred_fallthru
          _
        // Predicated region
        $region33: #{phi_forward.1} parent=11 // pred_check
          %p243 = pneg %p167
        $region34: #{phi_forward.1} parent=11 // pred_check_branch
          %245 = sbr.rel (%p243) target = $region36
        $region35: #{phi_forward.1} parent=11 // pred_region
          _
        $region36: #{phi_forward.1} parent=11 // pred_fallthru
          _
      $region12: #{phi_forward.1} parent=5 // pred_fallthru
        _
      %p246 = scmp.lt.s32.totalorder %s15, 2
      // Predicated region
      $region37: #{phi_forward.1} parent=5 // pred_check
        %p247 = pneg %p246
      $region38: #{phi_forward.1} parent=5 // pred_check_branch
        %249 = sbr.rel (%p247) target = $region40
      $region39: #{phi_forward.1} parent=5 // pred_region
        // Predicated region
        $region41: #{phi_forward.1} parent=39 // pred_check
          %p250 = pneg %p35
        $region42: #{phi_forward.1} parent=39 // pred_check_branch
          %252 = sbr.rel (%p250) target = $region44
        $region43: #{phi_forward.1} parent=39 // pred_region
          %p253 = scmp.lt.s32.totalorder %s15, 1
          %s254 = scalar_select %p253, %s15, 1
          %s255 = smul.addr %s254, 8
          %s256 = scalar_lea.vmem %s0, %s255
        $region44: #{phi_forward.1} parent=39 // pred_fallthru
          _
      $region40: #{phi_forward.1} parent=5 // pred_fallthru
        _
      %p257 = scmp.le.s32.totalorder 1, %s15
      %p258 = scmp.lt.s32.totalorder %s15, 3
      %p259 = pnand %p257, %p258
      %p260 = pneg %p259
      // Predicated region
      $region45: #{phi_forward.1} parent=5 // pred_check
        _
      $region46: #{phi_forward.1} parent=5 // pred_check_branch
        %262 = sbr.rel (%p259) target = $region48
      $region47: #{phi_forward.1} parent=5 // pred_region
        %s263 = ssub.s32 %s15, 1
        // Predicated region
        $region49: #{phi_forward.1} parent=47 // pred_check
          %p264 = pneg %p104
        $region50: #{phi_forward.1} parent=47 // pred_check_branch
          %266 = sbr.rel (%p264) target = $region52
        $region51: #{phi_forward.1} parent=47 // pred_region
          %267 = dma.done [#allocation3], 2048
        $region52: #{phi_forward.1} parent=47 // pred_fallthru
          _
        // Predicated region
        $region53: #{phi_forward.1} parent=47 // pred_check
          %p268 = pneg %p146
        $region54: #{phi_forward.1} parent=47 // pred_check_branch
          %270 = sbr.rel (%p268) target = $region56
        $region55: #{phi_forward.1} parent=47 // pred_region
          %271 = dma.done [#allocation5], 2048
        $region56: #{phi_forward.1} parent=47 // pred_fallthru
          _
        %p272 = scmp.lt.s32.totalorder %s20, 1
        %s273 = scalar_select %p272, %s20, 1
        %s274 = smul.addr %s273, 8
        %s275 = scalar_lea.vmem %s0, %s274
        %p276 = pneg %p41
        %p277 = pneg %p38
        %p278 = pneg %p62
        %p279 = pneg %p59
        %p280 = pneg %p83
        %p281 = pneg %p80
        %p282 = pneg %p104
        %p283 = pneg %p101
        %p284 = pneg %p125
        %p285 = pneg %p122
        %p286 = pneg %p146
        %p287 = pneg %p143
        %p288 = pneg %p167
        %p289 = pneg %p164
        %p290 = pneg %p193
        %p291 = pneg %p190
        %p292 = scmp.lt.s32.totalorder %s20, 1
        %s293 = scalar_select %p292, %s20, 1
        %s294 = smul.addr %s293, 8
        %s295 = scalar_lea.vmem %s7, %s294
        %p296 = scmp.lt.s32.totalorder %s20, 1
        %s297 = scalar_select %p296, %s20, 1
        %s298 = smul.addr %s297, 8
        %s299 = scalar_lea.vmem %s0, %s298
        %p300 = scmp.lt.s32.totalorder %s20, 1
        %s301 = scalar_select %p300, %s20, 1
        %s302 = smul.addr %s301, 8
        %s303 = scalar_lea.vmem %s7, %s302
        %v304 = vld [vmem:[%s299] sm:$0xff]
        %v305 = vld [vmem:[%s1] sm:$0xf]
        %v306 = vld [vmem:[%s2] sm:$0x1]
        %v308 = vlaneseq
        %v309 = vshrl.u32 %v308, 7
        %v310 = vsub.s32 0, %v309
        %v311 = vrot.slane %v306, %v310
        %vm313 = vcmask 31744
        %v315 = vsel %vm313, %v304, 0
        %vm317 = vcmask 1043456
        %v319 = vsel %vm317, %v305, 0
        %321 = vmatprep.subr.mxu0 0.0
        %322 = vmatpush1.msra.mxu0 0.0
        %323 = vmatprep.subr.mxu0 0.0
        %324 = vmatpush1.msra.mxu0 0.0
        %325 = vmatprep.subr.mxu0 0.0
        %326 = vmatpush1.msra.mxu0 0.0
        %327 = vmatprep.subr.mxu0 0.0
        %328 = vmatpush1.msra.mxu0 0.0
        %329 = vmatprep.subr.mxu0 0.0
        %330 = vmatpush1.msra.mxu0 0.0
        %331 = vmatprep.subr.mxu0 0.0
        %332 = vmatpush1.msra.mxu0 0.0
        %333 = vmatprep.subr.mxu0 0.0
        %334 = vmatpush1.msra.mxu0 0.0
        %335 = vmatprep.subr.mxu0 0.0
        %336 = vmatpush1.msra.mxu0 0.0
        %337 = vmatprep.subr.mxu0 0.0
        %338 = vmatpush1.msra.mxu0 0.0
        %339 = vmatprep.subr.mxu0 0.0
        %340 = vmatpush1.msra.mxu0 0.0
        %341 = vmatprep.subr.mxu0 0.0
        %342 = vmatpush1.msra.mxu0 0.0
        %343 = vmatprep.subr.mxu0 0.0
        %344 = vmatpush1.msra.mxu0 0.0
        %345 = vmatprep.subr.mxu0 0.0
        %346 = vmatpush1.msra.mxu0 0.0
        %347 = vmatprep.subr.mxu0 0.0
        %348 = vmatpush1.msra.mxu0 0.0
        %349 = vmatprep.subr.mxu0 0.0
        %350 = vmatpush1.msra.mxu0 0.0
        %351 = vmatprep.subr.mxu0 0.0
        %352 = vmatpush1.msra.mxu0 %v319
        %353 = vmatprep.subr.mxu0 0.0
        %354 = vmatpush2.msra.mxu0 0.0
        %355 = vmatprep.subr.mxu0 0.0
        %356 = vmatpush2.msra.mxu0 0.0
        %357 = vmatprep.subr.mxu0 0.0
        %358 = vmatpush2.msra.mxu0 0.0
        %359 = vmatprep.subr.mxu0 0.0
        %360 = vmatpush2.msra.mxu0 0.0
        %361 = vmatprep.subr.mxu0 0.0
        %362 = vmatpush2.msra.mxu0 0.0
        %363 = vmatprep.subr.mxu0 0.0
        %364 = vmatpush2.msra.mxu0 0.0
        %365 = vmatprep.subr.mxu0 0.0
        %366 = vmatpush2.msra.mxu0 0.0
        %367 = vmatprep.subr.mxu0 0.0
        %368 = vmatpush2.msra.mxu0 0.0
        %369 = vmatprep.subr.mxu0 0.0
        %370 = vmatpush2.msra.mxu0 0.0
        %371 = vmatprep.subr.mxu0 0.0
        %372 = vmatpush2.msra.mxu0 0.0
        %373 = vmatprep.subr.mxu0 0.0
        %374 = vmatpush2.msra.mxu0 0.0
        %375 = vmatprep.subr.mxu0 0.0
        %376 = vmatpush2.msra.mxu0 0.0
        %377 = vmatprep.subr.mxu0 0.0
        %378 = vmatpush2.msra.mxu0 0.0
        %379 = vmatprep.subr.mxu0 0.0
        %380 = vmatpush2.msra.mxu0 0.0
        %381 = vmatprep.subr.mxu0 0.0
        %382 = vmatpush2.msra.mxu0 0.0
        %383 = vmatprep.subr.mxu0 0.0
        %384 = vmatpush2.msra.mxu0 0.0
        %385 = vmatprep.mubr.f32.mxu0 0.0
        %386 = vmatmul.mubr.f32.gmra.mxu0 %v315
        %v387 = vpop.f32.mrf.mxu0
        %v388 = vadd.f32 %v311, %v387
        %v389 = vpop.f32.mrf.mxu0
        %390 = vdwg.mxu0
        %v391 = vmax.f32 %v388, 0.0
        %v392 = vld [vmem:[#allocation2] sm:$0xff]
        %v393 = vld [vmem:[#allocation2 + $0x8] sm:$0xff]
        %v394 = vld [vmem:[#allocation2 + $0x10] sm:$0xff]
        %v395 = vld [vmem:[#allocation2 + $0x18] sm:$0xff]
        %v396 = vld [vmem:[#allocation2 + $0x20] sm:$0xff]
        %v397 = vld [vmem:[#allocation2 + $0x28] sm:$0xff]
        %v398 = vld [vmem:[#allocation2 + $0x30] sm:$0xff]
        %v399 = vld [vmem:[#allocation2 + $0x38] sm:$0xff]
        %v400 = vld [vmem:[#allocation2 + $0x40] sm:$0xff]
        %v401 = vld [vmem:[#allocation2 + $0x48] sm:$0xff]
        %v402 = vld [vmem:[#allocation2 + $0x50] sm:$0xff]
        %v403 = vld [vmem:[#allocation2 + $0x58] sm:$0xff]
        %v404 = vld [vmem:[#allocation2 + $0x60] sm:$0xff]
        %v405 = vld [vmem:[#allocation2 + $0x68] sm:$0xff]
        %v406 = vld [vmem:[#allocation2 + $0x70] sm:$0xff]
        %v407 = vld [vmem:[#allocation2 + $0x78] sm:$0xff]
        %v408 = vld [vmem:[%s4] sm:$0x1]
        %v410 = vlaneseq
        %v411 = vshrl.u32 %v410, 7
        %v412 = vsub.s32 0, %v411
        %v413 = vrot.slane %v408, %v412
        %415 = vmatprep.subr.mxu0 0.0
        %416 = vmatpush1.msra.mxu0 %v407
        %417 = vmatprep.subr.mxu0 0.0
        %418 = vmatpush1.msra.mxu0 %v406
        %419 = vmatprep.subr.mxu0 0.0
        %420 = vmatpush1.msra.mxu0 %v405
        %421 = vmatprep.subr.mxu0 0.0
        %422 = vmatpush1.msra.mxu0 %v404
        %423 = vmatprep.subr.mxu0 0.0
        %424 = vmatpush1.msra.mxu0 %v403
        %425 = vmatprep.subr.mxu0 0.0
        %426 = vmatpush1.msra.mxu0 %v402
        %427 = vmatprep.subr.mxu0 0.0
        %428 = vmatpush1.msra.mxu0 %v401
        %429 = vmatprep.subr.mxu0 0.0
        %430 = vmatpush1.msra.mxu0 %v400
        %431 = vmatprep.subr.mxu0 0.0
        %432 = vmatpush1.msra.mxu0 %v399
        %433 = vmatprep.subr.mxu0 0.0
        %434 = vmatpush1.msra.mxu0 %v398
        %435 = vmatprep.subr.mxu0 0.0
        %436 = vmatpush1.msra.mxu0 %v397
        %437 = vmatprep.subr.mxu0 0.0
        %438 = vmatpush1.msra.mxu0 %v396
        %439 = vmatprep.subr.mxu0 0.0
        %440 = vmatpush1.msra.mxu0 %v395
        %441 = vmatprep.subr.mxu0 0.0
        %442 = vmatpush1.msra.mxu0 %v394
        %443 = vmatprep.subr.mxu0 0.0
        %444 = vmatpush1.msra.mxu0 %v393
        %445 = vmatprep.subr.mxu0 0.0
        %446 = vmatpush1.msra.mxu0 %v392
        %447 = vmatprep.subr.mxu0 0.0
        %448 = vmatpush2.msra.mxu0 0.0
        %449 = vmatprep.subr.mxu0 0.0
        %450 = vmatpush2.msra.mxu0 0.0
        %451 = vmatprep.subr.mxu0 0.0
        %452 = vmatpush2.msra.mxu0 0.0
        %453 = vmatprep.subr.mxu0 0.0
        %454 = vmatpush2.msra.mxu0 0.0
        %455 = vmatprep.subr.mxu0 0.0
        %456 = vmatpush2.msra.mxu0 0.0
        %457 = vmatprep.subr.mxu0 0.0
        %458 = vmatpush2.msra.mxu0 0.0
        %459 = vmatprep.subr.mxu0 0.0
        %460 = vmatpush2.msra.mxu0 0.0
        %461 = vmatprep.subr.mxu0 0.0
        %462 = vmatpush2.msra.mxu0 0.0
        %463 = vmatprep.subr.mxu0 0.0
        %464 = vmatpush2.msra.mxu0 0.0
        %465 = vmatprep.subr.mxu0 0.0
        %466 = vmatpush2.msra.mxu0 0.0
        %467 = vmatprep.subr.mxu0 0.0
        %468 = vmatpush2.msra.mxu0 0.0
        %469 = vmatprep.subr.mxu0 0.0
        %470 = vmatpush2.msra.mxu0 0.0
        %471 = vmatprep.subr.mxu0 0.0
        %472 = vmatpush2.msra.mxu0 0.0
        %473 = vmatprep.subr.mxu0 0.0
        %474 = vmatpush2.msra.mxu0 0.0
        %475 = vmatprep.subr.mxu0 0.0
        %476 = vmatpush2.msra.mxu0 0.0
        %477 = vmatprep.subr.mxu0 0.0
        %478 = vmatpush2.msra.mxu0 0.0
        %479 = vmatprep.mubr.f32.mxu0 0.0
        %480 = vmatmul.mubr.f32.gmra.mxu0 %v391
        %v481 = vpop.f32.mrf.mxu0
        %v482 = vadd.f32 %v413, %v481
        %v483 = vpop.f32.mrf.mxu0
        %484 = vdwg.mxu0
        %v485 = vmax.f32 %v482, 0.0
        %v486 = vld [vmem:[#allocation4] sm:$0xff]
        %v487 = vld [vmem:[#allocation4 + $0x8] sm:$0xff]
        %v488 = vld [vmem:[#allocation4 + $0x10] sm:$0xff]
        %v489 = vld [vmem:[#allocation4 + $0x18] sm:$0xff]
        %v490 = vld [vmem:[#allocation4 + $0x20] sm:$0xff]
        %v491 = vld [vmem:[#allocation4 + $0x28] sm:$0xff]
        %v492 = vld [vmem:[#allocation4 + $0x30] sm:$0xff]
        %v493 = vld [vmem:[#allocation4 + $0x38] sm:$0xff]
        %v494 = vld [vmem:[#allocation4 + $0x40] sm:$0xff]
        %v495 = vld [vmem:[#allocation4 + $0x48] sm:$0xff]
        %v496 = vld [vmem:[#allocation4 + $0x50] sm:$0xff]
        %v497 = vld [vmem:[#allocation4 + $0x58] sm:$0xff]
        %v498 = vld [vmem:[#allocation4 + $0x60] sm:$0xff]
        %v499 = vld [vmem:[#allocation4 + $0x68] sm:$0xff]
        %v500 = vld [vmem:[#allocation4 + $0x70] sm:$0xff]
        %v501 = vld [vmem:[#allocation4 + $0x78] sm:$0xff]
        %v502 = vld [vmem:[%s6] sm:$0x1]
        %v504 = vlaneseq
        %v505 = vshrl.u32 %v504, 7
        %v506 = vsub.s32 0, %v505
        %v507 = vrot.slane %v502, %v506
        %509 = vmatprep.subr.mxu0 0.0
        %510 = vmatpush1.msra.mxu0 %v501
        %511 = vmatprep.subr.mxu0 0.0
        %512 = vmatpush1.msra.mxu0 %v500
        %513 = vmatprep.subr.mxu0 0.0
        %514 = vmatpush1.msra.mxu0 %v499
        %515 = vmatprep.subr.mxu0 0.0
        %516 = vmatpush1.msra.mxu0 %v498
        %517 = vmatprep.subr.mxu0 0.0
        %518 = vmatpush1.msra.mxu0 %v497
        %519 = vmatprep.subr.mxu0 0.0
        %520 = vmatpush1.msra.mxu0 %v496
        %521 = vmatprep.subr.mxu0 0.0
        %522 = vmatpush1.msra.mxu0 %v495
        %523 = vmatprep.subr.mxu0 0.0
        %524 = vmatpush1.msra.mxu0 %v494
        %525 = vmatprep.subr.mxu0 0.0
        %526 = vmatpush1.msra.mxu0 %v493
        %527 = vmatprep.subr.mxu0 0.0
        %528 = vmatpush1.msra.mxu0 %v492
        %529 = vmatprep.subr.mxu0 0.0
        %530 = vmatpush1.msra.mxu0 %v491
        %531 = vmatprep.subr.mxu0 0.0
        %532 = vmatpush1.msra.mxu0 %v490
        %533 = vmatprep.subr.mxu0 0.0
        %534 = vmatpush1.msra.mxu0 %v489
        %535 = vmatprep.subr.mxu0 0.0
        %536 = vmatpush1.msra.mxu0 %v488
        %537 = vmatprep.subr.mxu0 0.0
        %538 = vmatpush1.msra.mxu0 %v487
        %539 = vmatprep.subr.mxu0 0.0
        %540 = vmatpush1.msra.mxu0 %v486
        %541 = vmatprep.subr.mxu0 0.0
        %542 = vmatpush2.msra.mxu0 0.0
        %543 = vmatprep.subr.mxu0 0.0
        %544 = vmatpush2.msra.mxu0 0.0
        %545 = vmatprep.subr.mxu0 0.0
        %546 = vmatpush2.msra.mxu0 0.0
        %547 = vmatprep.subr.mxu0 0.0
        %548 = vmatpush2.msra.mxu0 0.0
        %549 = vmatprep.subr.mxu0 0.0
        %550 = vmatpush2.msra.mxu0 0.0
        %551 = vmatprep.subr.mxu0 0.0
        %552 = vmatpush2.msra.mxu0 0.0
        %553 = vmatprep.subr.mxu0 0.0
        %554 = vmatpush2.msra.mxu0 0.0
        %555 = vmatprep.subr.mxu0 0.0
        %556 = vmatpush2.msra.mxu0 0.0
        %557 = vmatprep.subr.mxu0 0.0
        %558 = vmatpush2.msra.mxu0 0.0
        %559 = vmatprep.subr.mxu0 0.0
        %560 = vmatpush2.msra.mxu0 0.0
        %561 = vmatprep.subr.mxu0 0.0
        %562 = vmatpush2.msra.mxu0 0.0
        %563 = vmatprep.subr.mxu0 0.0
        %564 = vmatpush2.msra.mxu0 0.0
        %565 = vmatprep.subr.mxu0 0.0
        %566 = vmatpush2.msra.mxu0 0.0
        %567 = vmatprep.subr.mxu0 0.0
        %568 = vmatpush2.msra.mxu0 0.0
        %569 = vmatprep.subr.mxu0 0.0
        %570 = vmatpush2.msra.mxu0 0.0
        %571 = vmatprep.subr.mxu0 0.0
        %572 = vmatpush2.msra.mxu0 0.0
        %573 = vmatprep.mubr.f32.mxu0 0.0
        %574 = vmatmul.mubr.f32.gmra.mxu0 %v485
        %v575 = vpop.f32.mrf.mxu0
        %v576 = vadd.f32 %v507, %v575
        %v577 = vpop.f32.mrf.mxu0
        %578 = vdwg.mxu0
        %579 = vst.msk [vmem:[%s303] sm:$0xff] %vm313, %v576
        %p580 = scmp.lt.s32.totalorder %s20, 1
        %s581 = scalar_select %p580, %s20, 1
        %s582 = smul.addr %s581, 8
        %s583 = scalar_lea.vmem %s7, %s582
        // Predicated region
        $region57: #{phi_forward.1} parent=47 // pred_check
          %p584 = pneg %p190
        $region58: #{phi_forward.1} parent=47 // pred_check_branch
          %586 = sbr.rel (%p584) target = $region60
        $region59: #{phi_forward.1} parent=47 // pred_region
          _
        $region60: #{phi_forward.1} parent=47 // pred_fallthru
          _
      $region48: #{phi_forward.1} parent=5 // pred_fallthru
        _
      %p587 = scmp.le.s32.totalorder 2, %s15
      // Predicated region
      $region61: #{phi_forward.1} parent=5 // pred_check
        %p588 = pneg %p587
      $region62: #{phi_forward.1} parent=5 // pred_check_branch
        %590 = sbr.rel (%p588) target = $region64
      $region63: #{phi_forward.1} parent=5 // pred_region
        %s591 = ssub.s32 %s15, 2
        // Predicated region
        $region65: #{phi_forward.1} parent=63 // pred_check
          %p592 = pneg %p196
        $region66: #{phi_forward.1} parent=63 // pred_check_branch
          %594 = sbr.rel (%p592) target = $region68
        $region67: #{phi_forward.1} parent=63 // pred_region
          %p595 = scmp.lt.s32.totalorder %s21, 1
          %s596 = scalar_select %p595, %s21, 1
          %s597 = smul.addr %s596, 8
          %s598 = scalar_lea.vmem %s7, %s597
        $region68: #{phi_forward.1} parent=63 // pred_fallthru
          _
      $region64: #{phi_forward.1} parent=5 // pred_fallthru
        _
    $region6: #{phi_forward.1} parent=1 // loop_footer
      %s19 = sadd.s32 1, %s15
    $region7: #{phi_forward.1} parent=1 // loop_footer_branch
      %14 = sbr.rel target = $region3
    $region8: #{phi_forward.1} parent=1 // loop_exit
      _
    %599 = vsyncpa [#allocation3], 1
    %s600 = scalar_lea.sflag [#allocation3], 1
    %601 = vsyncpa %s600, 1
    %602 = vsyncpa [#allocation5], 1

</llo_original>
